<compile_context>
chip_gen: v5e
topology: v5e:2x2
jax: 0.10.0
libtpu: 0.0.40
codegen_flags: <defaults>
</compile_context>

<pallas_src>
import jax
import jax.numpy as jnp
import numpy as np
from jax import lax
from jax.experimental import pallas as pl
from jax.experimental.pallas import tpu as pltpu

# ----------------------------- config (small, fixed) ------------------------
QST_VOCAB_SIZE = 32    # V
WORD_EMBED_SIZE = 32   # E
HIDDEN_SIZE = 32       # H
NUM_LAYERS = 2         # L (kernel is written for L == 2)
EMBED_SIZE = 32        # output feature size
BATCH = 2              # B
SEQ_LEN = 8            # T
BATCH_PAD = 8          # Bp: batch padded to sublane granularity

# packed "narrow" parameter slab (lane width = 32 = E = EMBED_SIZE)
_ROW_EMB = 0
_ROW_WFC = _ROW_EMB + QST_VOCAB_SIZE                       # 32
_ROW_BFC = _ROW_WFC + 2 * NUM_LAYERS * HIDDEN_SIZE         # 160
_NARROW_ROWS = ((_ROW_BFC + 1 + 7) // 8) * 8               # 168

# packed "wide" parameter slab (lane width = 8H = 256)
_ROW_WIH0 = 0
_ROW_BW = _ROW_WIH0 + WORD_EMBED_SIZE                      # 32
_ROW_WSTACK = ((_ROW_BW + 1 + 7) // 8) * 8                 # 40
_WIDE_ROWS = _ROW_WSTACK + 2 * HIDDEN_SIZE                 # 104


def qst_encoder_kernel(qidx_ref, p_narrow_ref, p_wide_ref, out_ref):
    """Whole forward (including embedding gather) in one VMEM-resident kernel.

    qidx_ref : [(T+1)*Bp, 1] int32, time-major padded token ids (-1 = no token).
    p_narrow_ref : [168, 32]  f32   (emb | fc_w^T | fc_b)
    p_wide_ref   : [104, 256] f32   (wih0_wide | b_wide | w_stack), gate layout
                   along 8H lanes is interleaved [i0 i1 | f0 f1 | g0 g1 | o0 o1].
    """
    V, E, H, T = QST_VOCAB_SIZE, WORD_EMBED_SIZE, HIDDEN_SIZE, SEQ_LEN
    Bp = BATCH_PAD
    B = out_ref.shape[0]
    H2 = 2 * H            # combined (layer0 | layer1) state width
    G8 = 8 * H            # combined gate width (4 gates x 2 layers)
    f32 = jnp.float32

    # ---- prologue (batched, off the recurrent critical path) ---------------
    # Embedding gather as a one-hot matmul (no dynamic indexing), then tanh.
    qi = qidx_ref[...]                                          # [(T+1)*Bp, 1]
    vocab = lax.broadcasted_iota(jnp.int32, ((T + 1) * Bp, V), 1)
    onehot = jnp.where(vocab == qi, 1.0, 0.0).astype(f32)       # idx=-1 -> all 0
    emb = p_narrow_ref[_ROW_EMB:_ROW_EMB + V, :]                 # [V, E]
    x = jnp.tanh(jnp.dot(onehot, emb, preferred_element_type=f32))  # [(T+1)*Bp, E]

    # Batched layer-0 input projection for every timestep, both layers' biases
    # folded in (layer-1 columns of wih0_wide are zero, so its xadd part = b1).
    wih0w = p_wide_ref[_ROW_WIH0:_ROW_WIH0 + E, :]               # [E, 8H]
    b_wide = p_wide_ref[_ROW_BW:_ROW_BW + 1, :]                  # [1, 8H]
    xadd = jnp.dot(x, wih0w, preferred_element_type=f32) + b_wide  # [(T+1)*Bp, 8H]

    wstack = p_wide_ref[_ROW_WSTACK:_ROW_WSTACK + H2, :]         # [2H, 8H]

    # Hoisted lane masks / scales (reused by every unrolled wavefront step).
    lane8 = lax.broadcasted_iota(jnp.int32, (Bp, G8), 1)
    is_g = jnp.logical_and(lane8 >= 4 * H, lane8 < 6 * H)        # cell-cand. gate
    gate_scale = jnp.where(is_g, 1.0, 0.5).astype(f32)
    lane2 = lax.broadcasted_iota(jnp.int32, (Bp, H2), 1)
    is_l0 = lane2 < H                                            # layer-0 half

    # Combined states: hb = [h0 | h1], cb = [c0 | c1]  ([Bp, 2H]).
    hb = jnp.zeros((Bp, H2), f32)
    cb = jnp.zeros((Bp, H2), f32)

    # ---- wavefront over both LSTM layers ------------------------------------
    # Wavefront step s: layer 0 runs timestep s (s<T), layer 1 runs timestep
    # s-1 (s>=1); one fused dot per step -> serial chain of T dots (was 2T).
    for s in range(T + 1):                                       # static unroll
        add = xadd[s * Bp:(s + 1) * Bp, :]                       # aligned [Bp, 8H]
        if s == 0:
            gall = add                                           # hb == 0 -> skip dot
        else:
            gall = add + jnp.dot(hb, wstack, preferred_element_type=f32)
        # One EUP pass: sigmoid(x) = 0.5*(tanh(x/2)+1); "g" gate keeps tanh(x).
        y = jnp.tanh(gall * gate_scale)
        act = jnp.where(is_g, y, 0.5 * y + 0.5)
        i_b = act[:, 0 * H2:1 * H2]
        f_b = act[:, 1 * H2:2 * H2]
        g_b = act[:, 2 * H2:3 * H2]
        o_b = act[:, 3 * H2:4 * H2]
        c_new = f_b * cb + i_b * g_b
        h_new = o_b * jnp.tanh(c_new)
        if s == 0:           # layer 1 has not started: keep its half at zero
            cb = jnp.where(is_l0, c_new, cb)
            hb = jnp.where(is_l0, h_new, hb)
        elif s == T:         # layer 0 already finished: freeze its half
            cb = jnp.where(is_l0, cb, c_new)
            hb = jnp.where(is_l0, hb, h_new)
        else:
            cb = c_new
            hb = h_new

    # ---- epilogue: cat(h,c) -> tanh -> fc ------------------------------------
    h0 = hb[:, :H]
    h1 = hb[:, H:]
    c0 = cb[:, :H]
    c1 = cb[:, H:]
    feat = jnp.tanh(jnp.concatenate([h0, c0, h1, c1], axis=1))   # [Bp, 2*L*H]
    wfc = p_narrow_ref[_ROW_WFC:_ROW_WFC + 2 * NUM_LAYERS * HIDDEN_SIZE, :]
    bfc = p_narrow_ref[_ROW_BFC:_ROW_BFC + 1, :]
    res = jnp.dot(feat, wfc, preferred_element_type=f32) + bfc   # [Bp, EMBED]
    out_ref[...] = res[:B, :]


# ----------------------------- parameter packing ----------------------------
def _interleave_gates(a, b, H):
    """Columns in PyTorch gate order (i,f,g,o), width H per gate, for two
    layers -> interleaved [i0 i1 | f0 f1 | g0 g1 | o0 o1] along the last axis."""
    parts = []
    for g in range(4):
        parts.append(a[..., g * H:(g + 1) * H])
        parts.append(b[..., g * H:(g + 1) * H])
    return jnp.concatenate(parts, axis=-1)


def pack_params(params):
    """One-time (init-time) packing of module parameters into kernel slabs."""
    H, E, L, V = HIDDEN_SIZE, WORD_EMBED_SIZE, NUM_LAYERS, QST_VOCAB_SIZE
    l0, l1 = params["lstm"]
    wih0 = jnp.transpose(l0["w_ih"])                  # [E, 4H]
    whh0 = jnp.transpose(l0["w_hh"])                  # [H, 4H]
    b0 = (l0["b_ih"] + l0["b_hh"])[None, :]           # [1, 4H]
    wih1 = jnp.transpose(l1["w_ih"])                  # [H, 4H]
    whh1 = jnp.transpose(l1["w_hh"])                  # [H, 4H]
    b1 = (l1["b_ih"] + l1["b_hh"])[None, :]           # [1, 4H]

    z_e = jnp.zeros((E, 4 * H), jnp.float32)
    z_h = jnp.zeros((H, 4 * H), jnp.float32)

    wih0_wide = _interleave_gates(wih0, z_e, H)       # [E, 8H] (layer-1 cols 0)
    b_wide = _interleave_gates(b0, b1, H)             # [1, 8H]
    wstack = jnp.concatenate(
        [_interleave_gates(whh0, wih1, H),            # rows 0:H   (from h0)
         _interleave_gates(z_h, whh1, H)],            # rows H:2H  (from h1)
        axis=0)                                       # [2H, 8H]

    p_wide = jnp.zeros((_WIDE_ROWS, 8 * H), jnp.float32)
    p_wide = p_wide.at[_ROW_WIH0:_ROW_WIH0 + E, :].set(wih0_wide)
    p_wide = p_wide.at[_ROW_BW:_ROW_BW + 1, :].set(b_wide)
    p_wide = p_wide.at[_ROW_WSTACK:_ROW_WSTACK + 2 * H, :].set(wstack)

    # narrow slab works because V == E == EMBED_SIZE == 32 in this config
    p_narrow = jnp.zeros((_NARROW_ROWS, EMBED_SIZE), jnp.float32)
    p_narrow = p_narrow.at[_ROW_EMB:_ROW_EMB + V, :].set(params["embedding"])
    p_narrow = p_narrow.at[_ROW_WFC:_ROW_WFC + 2 * L * H, :].set(
        jnp.transpose(params["fc_w"]))
    p_narrow = p_narrow.at[_ROW_BFC:_ROW_BFC + 1, :].set(params["fc_b"][None, :])

    return {"p_narrow": p_narrow, "p_wide": p_wide}


# ----------------------------- forward wrapper -------------------------------
def qst_encoder_forward(question, packed):
    """question: int32 [B, T].  Returns [B, EMBED_SIZE] float32."""
    B, T = question.shape
    Bp = BATCH_PAD
    # Time-major, batch-padded token-id slab with one extra wavefront row-group
    # (id = -1 -> zero one-hot), so the final layer-1-only step's bias term
    # comes out of the same batched projection.  Tiny int glue; everything
    # float runs inside the kernel.
    qidx = jnp.full((T + 1, Bp), -1, jnp.int32)
    qidx = qidx.at[:T, :B].set(jnp.transpose(question))
    qidx = qidx.reshape((T + 1) * Bp, 1)

    vmem = pl.BlockSpec(memory_space=pltpu.MemorySpace.VMEM)
    return pl.pallas_call(
        qst_encoder_kernel,
        out_shape=jax.ShapeDtypeStruct((B, EMBED_SIZE), jnp.float32),
        in_specs=[vmem, vmem, vmem],
        out_specs=vmem,
    )(qidx, packed["p_narrow"], packed["p_wide"])


# ----------------------------- synthetic params ------------------------------
def init_params(key):
    """Deterministic synthetic parameters matching the PyTorch module shapes."""
    ks = jax.random.split(key, 16)
    H, E, L = HIDDEN_SIZE, WORD_EMBED_SIZE, NUM_LAYERS
    s = 1.0 / np.sqrt(H)
    params = {
        "embedding": jax.random.normal(ks[0], (QST_VOCAB_SIZE, E), jnp.float32),
        "fc_w": jax.random.uniform(ks[1], (EMBED_SIZE, 2 * L * H), jnp.float32, -s, s),
        "fc_b": jax.random.uniform(ks[2], (EMBED_SIZE,), jnp.float32, -s, s),
        "lstm": [],
    }
    for layer in range(L):
        in_dim = E if layer == 0 else H
        k = ks[3 + 4 * layer: 3 + 4 * (layer + 1)]
        params["lstm"].append({
            "w_ih": jax.random.uniform(k[0], (4 * H, in_dim), jnp.float32, -s, s),
            "w_hh": jax.random.uniform(k[1], (4 * H, H), jnp.float32, -s, s),
            "b_ih": jax.random.uniform(k[2], (4 * H,), jnp.float32, -s, s),
            "b_hh": jax.random.uniform(k[3], (4 * H,), jnp.float32, -s, s),
        })
    return params


# ----------------------------- pure-JAX reference ----------------------------
def qst_encoder_reference(question, params):
    emb = jnp.take(params["embedding"], question, axis=0)        # [B, T, E]
    x = jnp.tanh(jnp.transpose(emb, (1, 0, 2)))                  # [T, B, E]
    B = question.shape[0]
    H = HIDDEN_SIZE
    hs, cs = [], []
    inp = x
    for lp in params["lstm"]:
        h = jnp.zeros((B, H), jnp.float32)
        c = jnp.zeros((B, H), jnp.float32)
        outs = []
        for t in range(SEQ_LEN):
            g = inp[t] @ lp["w_ih"].T + h @ lp["w_hh"].T + lp["b_ih"] + lp["b_hh"]
            i = jax.nn.sigmoid(g[:, 0 * H:1 * H])
            f = jax.nn.sigmoid(g[:, 1 * H:2 * H])
            gg = jnp.tanh(g[:, 2 * H:3 * H])
            o = jax.nn.sigmoid(g[:, 3 * H:4 * H])
            c = f * c + i * gg
            h = o * jnp.tanh(c)
            outs.append(h)
        hs.append(h)
        cs.append(c)
        inp = jnp.stack(outs, axis=0)
    feat = jnp.concatenate([hs[0], cs[0], hs[1], cs[1]], axis=1)
    feat = jnp.tanh(feat)
    return feat @ params["fc_w"].T + params["fc_b"]


if __name__ == "__main__":
    key = jax.random.PRNGKey(0)
    pkey, qkey = jax.random.split(key)
    params = init_params(pkey)
    packed = jax.tree_util.tree_map(jax.block_until_ready, pack_params(params))
    question = jax.random.randint(qkey, (BATCH, SEQ_LEN), 0, QST_VOCAB_SIZE,
                                  dtype=jnp.int32)

    forward = jax.jit(qst_encoder_forward)
    out = jax.block_until_ready(forward(question, packed))

    ref = jax.block_until_ready(qst_encoder_reference(question, params))
    assert out.shape == (BATCH, EMBED_SIZE)
    np.testing.assert_allclose(np.asarray(out), np.asarray(ref),
                               rtol=2e-4, atol=2e-4)
    print("KERNEL_OK")
</pallas_src>

<mosaic_0001>
module attributes {stable_mosaic.version = 11 : i64} {
  func.func @qst_encoder_kernel(%arg0: memref<72x1xi32, #tpu.memory_space<vmem>>, %arg1: memref<168x32xf32, #tpu.memory_space<vmem>>, %arg2: memref<104x256xf32, #tpu.memory_space<vmem>>, %arg3: memref<2x32xf32, #tpu.memory_space<vmem>>) attributes {dimension_semantics = [], scalar_prefetch = 0 : i64, scratch_operands = 0 : i64, tpu.core_type = #tpu.core_type<tc>} {
    %c0 = arith.constant 0 : index
    %c0_0 = arith.constant 0 : index
    %0 = vector.load %arg0[%c0, %c0_0] : memref<72x1xi32, #tpu.memory_space<vmem>>, vector<72x1xi32>
    %1 = tpu.iota {dimensions = array<i32: 1>} : vector<72x32xi32>
    %2 = vector.broadcast %0 : vector<72x1xi32> to vector<72x32xi32>
    %3 = arith.cmpi eq, %1, %2 : vector<72x32xi32>
    %cst = arith.constant 1.000000e+00 : f32
    %cst_1 = arith.constant 0.000000e+00 : f32
    %4 = vector.broadcast %cst : f32 to vector<72x32xf32>
    %5 = vector.broadcast %cst_1 : f32 to vector<72x32xf32>
    %6 = arith.select %3, %4, %5 : vector<72x32xi1>, vector<72x32xf32>
    %c0_2 = arith.constant 0 : index
    %c0_3 = arith.constant 0 : index
    %7 = vector.load %arg1[%c0_2, %c0_3] : memref<168x32xf32, #tpu.memory_space<vmem>>, vector<32x32xf32>
    %cst_4 = arith.constant dense<0.000000e+00> : vector<72x32xf32>
    %8 = tpu.matmul %6, %7, %cst_4 {dimension_numbers = #tpu.dot_dimension_numbers<[1], [0], [0], [1], [0, 0, 1, 1], [], []>} : vector<72x32xf32>, vector<32x32xf32>, vector<72x32xf32> -> vector<72x32xf32>
    %9 = math.tanh %8 : vector<72x32xf32>
    %c0_5 = arith.constant 0 : index
    %c0_6 = arith.constant 0 : index
    %10 = vector.load %arg2[%c0_5, %c0_6] : memref<104x256xf32, #tpu.memory_space<vmem>>, vector<32x256xf32>
    %c32 = arith.constant 32 : index
    %c0_7 = arith.constant 0 : index
    %11 = vector.load %arg2[%c32, %c0_7] : memref<104x256xf32, #tpu.memory_space<vmem>>, vector<1x256xf32>
    %cst_8 = arith.constant dense<0.000000e+00> : vector<72x256xf32>
    %12 = tpu.matmul %9, %10, %cst_8 {dimension_numbers = #tpu.dot_dimension_numbers<[1], [0], [0], [1], [0, 0, 1, 1], [], []>} : vector<72x32xf32>, vector<32x256xf32>, vector<72x256xf32> -> vector<72x256xf32>
    %13 = vector.broadcast %11 : vector<1x256xf32> to vector<72x256xf32>
    %14 = arith.addf %12, %13 : vector<72x256xf32>
    %c40 = arith.constant 40 : index
    %c0_9 = arith.constant 0 : index
    %15 = vector.load %arg2[%c40, %c0_9] : memref<104x256xf32, #tpu.memory_space<vmem>>, vector<64x256xf32>
    %16 = tpu.iota {dimensions = array<i32: 1>} : vector<8x256xi32>
    %c128_i32 = arith.constant 128 : i32
    %17 = vector.broadcast %c128_i32 : i32 to vector<8x256xi32>
    %18 = arith.cmpi sge, %16, %17 : vector<8x256xi32>
    %c192_i32 = arith.constant 192 : i32
    %19 = vector.broadcast %c192_i32 : i32 to vector<8x256xi32>
    %20 = arith.cmpi slt, %16, %19 : vector<8x256xi32>
    %21 = arith.andi %18, %20 : vector<8x256xi1>
    %cst_10 = arith.constant 1.000000e+00 : f32
    %cst_11 = arith.constant 5.000000e-01 : f32
    %22 = vector.broadcast %cst_10 : f32 to vector<8x256xf32>
    %23 = vector.broadcast %cst_11 : f32 to vector<8x256xf32>
    %24 = arith.select %21, %22, %23 : vector<8x256xi1>, vector<8x256xf32>
    %25 = tpu.iota {dimensions = array<i32: 1>} : vector<8x64xi32>
    %c32_i32 = arith.constant 32 : i32
    %26 = vector.broadcast %c32_i32 : i32 to vector<8x64xi32>
    %27 = arith.cmpi slt, %25, %26 : vector<8x64xi32>
    %cst_12 = arith.constant 0.000000e+00 : f32
    %28 = vector.broadcast %cst_12 : f32 to vector<8x64xf32>
    %cst_13 = arith.constant 0.000000e+00 : f32
    %29 = vector.broadcast %cst_13 : f32 to vector<8x64xf32>
    %30 = vector.extract_strided_slice %14 {offsets = [0, 0], sizes = [8, 256], strides = [1, 1]} : vector<72x256xf32> to vector<8x256xf32>
    %31 = arith.mulf %30, %24 : vector<8x256xf32>
    %32 = math.tanh %31 : vector<8x256xf32>
    %cst_14 = arith.constant 5.000000e-01 : f32
    %33 = vector.broadcast %cst_14 : f32 to vector<8x256xf32>
    %34 = arith.mulf %33, %32 : vector<8x256xf32>
    %cst_15 = arith.constant 5.000000e-01 : f32
    %35 = vector.broadcast %cst_15 : f32 to vector<8x256xf32>
    %36 = arith.addf %34, %35 : vector<8x256xf32>
    %37 = arith.select %21, %32, %36 : vector<8x256xi1>, vector<8x256xf32>
    %38 = vector.extract_strided_slice %37 {offsets = [0, 0], sizes = [8, 64], strides = [1, 1]} : vector<8x256xf32> to vector<8x64xf32>
    %39 = vector.extract_strided_slice %37 {offsets = [0, 64], sizes = [8, 64], strides = [1, 1]} : vector<8x256xf32> to vector<8x64xf32>
    %40 = vector.extract_strided_slice %37 {offsets = [0, 128], sizes = [8, 64], strides = [1, 1]} : vector<8x256xf32> to vector<8x64xf32>
    %41 = vector.extract_strided_slice %37 {offsets = [0, 192], sizes = [8, 64], strides = [1, 1]} : vector<8x256xf32> to vector<8x64xf32>
    %42 = arith.mulf %39, %29 : vector<8x64xf32>
    %43 = arith.mulf %38, %40 : vector<8x64xf32>
    %44 = arith.addf %42, %43 : vector<8x64xf32>
    %45 = math.tanh %44 : vector<8x64xf32>
    %46 = arith.mulf %41, %45 : vector<8x64xf32>
    %47 = arith.select %27, %44, %29 : vector<8x64xi1>, vector<8x64xf32>
    %48 = arith.select %27, %46, %28 : vector<8x64xi1>, vector<8x64xf32>
    %49 = vector.extract_strided_slice %14 {offsets = [8, 0], sizes = [8, 256], strides = [1, 1]} : vector<72x256xf32> to vector<8x256xf32>
    %cst_16 = arith.constant dense<0.000000e+00> : vector<8x256xf32>
    %50 = tpu.matmul %48, %15, %cst_16 {dimension_numbers = #tpu.dot_dimension_numbers<[1], [0], [0], [1], [0, 0, 1, 1], [], []>} : vector<8x64xf32>, vector<64x256xf32>, vector<8x256xf32> -> vector<8x256xf32>
    %51 = arith.addf %49, %50 : vector<8x256xf32>
    %52 = arith.mulf %51, %24 : vector<8x256xf32>
    %53 = math.tanh %52 : vector<8x256xf32>
    %cst_17 = arith.constant 5.000000e-01 : f32
    %54 = vector.broadcast %cst_17 : f32 to vector<8x256xf32>
    %55 = arith.mulf %54, %53 : vector<8x256xf32>
    %cst_18 = arith.constant 5.000000e-01 : f32
    %56 = vector.broadcast %cst_18 : f32 to vector<8x256xf32>
    %57 = arith.addf %55, %56 : vector<8x256xf32>
    %58 = arith.select %21, %53, %57 : vector<8x256xi1>, vector<8x256xf32>
    %59 = vector.extract_strided_slice %58 {offsets = [0, 0], sizes = [8, 64], strides = [1, 1]} : vector<8x256xf32> to vector<8x64xf32>
    %60 = vector.extract_strided_slice %58 {offsets = [0, 64], sizes = [8, 64], strides = [1, 1]} : vector<8x256xf32> to vector<8x64xf32>
    %61 = vector.extract_strided_slice %58 {offsets = [0, 128], sizes = [8, 64], strides = [1, 1]} : vector<8x256xf32> to vector<8x64xf32>
    %62 = vector.extract_strided_slice %58 {offsets = [0, 192], sizes = [8, 64], strides = [1, 1]} : vector<8x256xf32> to vector<8x64xf32>
    %63 = arith.mulf %60, %47 : vector<8x64xf32>
    %64 = arith.mulf %59, %61 : vector<8x64xf32>
    %65 = arith.addf %63, %64 : vector<8x64xf32>
    %66 = math.tanh %65 : vector<8x64xf32>
    %67 = arith.mulf %62, %66 : vector<8x64xf32>
    %68 = vector.extract_strided_slice %14 {offsets = [16, 0], sizes = [8, 256], strides = [1, 1]} : vector<72x256xf32> to vector<8x256xf32>
    %cst_19 = arith.constant dense<0.000000e+00> : vector<8x256xf32>
    %69 = tpu.matmul %67, %15, %cst_19 {dimension_numbers = #tpu.dot_dimension_numbers<[1], [0], [0], [1], [0, 0, 1, 1], [], []>} : vector<8x64xf32>, vector<64x256xf32>, vector<8x256xf32> -> vector<8x256xf32>
    %70 = arith.addf %68, %69 : vector<8x256xf32>
    %71 = arith.mulf %70, %24 : vector<8x256xf32>
    %72 = math.tanh %71 : vector<8x256xf32>
    %cst_20 = arith.constant 5.000000e-01 : f32
    %73 = vector.broadcast %cst_20 : f32 to vector<8x256xf32>
    %74 = arith.mulf %73, %72 : vector<8x256xf32>
    %cst_21 = arith.constant 5.000000e-01 : f32
    %75 = vector.broadcast %cst_21 : f32 to vector<8x256xf32>
    %76 = arith.addf %74, %75 : vector<8x256xf32>
    %77 = arith.select %21, %72, %76 : vector<8x256xi1>, vector<8x256xf32>
    %78 = vector.extract_strided_slice %77 {offsets = [0, 0], sizes = [8, 64], strides = [1, 1]} : vector<8x256xf32> to vector<8x64xf32>
    %79 = vector.extract_strided_slice %77 {offsets = [0, 64], sizes = [8, 64], strides = [1, 1]} : vector<8x256xf32> to vector<8x64xf32>
    %80 = vector.extract_strided_slice %77 {offsets = [0, 128], sizes = [8, 64], strides = [1, 1]} : vector<8x256xf32> to vector<8x64xf32>
    %81 = vector.extract_strided_slice %77 {offsets = [0, 192], sizes = [8, 64], strides = [1, 1]} : vector<8x256xf32> to vector<8x64xf32>
    %82 = arith.mulf %79, %65 : vector<8x64xf32>
    %83 = arith.mulf %78, %80 : vector<8x64xf32>
    %84 = arith.addf %82, %83 : vector<8x64xf32>
    %85 = math.tanh %84 : vector<8x64xf32>
    %86 = arith.mulf %81, %85 : vector<8x64xf32>
    %87 = vector.extract_strided_slice %14 {offsets = [24, 0], sizes = [8, 256], strides = [1, 1]} : vector<72x256xf32> to vector<8x256xf32>
    %cst_22 = arith.constant dense<0.000000e+00> : vector<8x256xf32>
    %88 = tpu.matmul %86, %15, %cst_22 {dimension_numbers = #tpu.dot_dimension_numbers<[1], [0], [0], [1], [0, 0, 1, 1], [], []>} : vector<8x64xf32>, vector<64x256xf32>, vector<8x256xf32> -> vector<8x256xf32>
    %89 = arith.addf %87, %88 : vector<8x256xf32>
    %90 = arith.mulf %89, %24 : vector<8x256xf32>
    %91 = math.tanh %90 : vector<8x256xf32>
    %cst_23 = arith.constant 5.000000e-01 : f32
    %92 = vector.broadcast %cst_23 : f32 to vector<8x256xf32>
    %93 = arith.mulf %92, %91 : vector<8x256xf32>
    %cst_24 = arith.constant 5.000000e-01 : f32
    %94 = vector.broadcast %cst_24 : f32 to vector<8x256xf32>
    %95 = arith.addf %93, %94 : vector<8x256xf32>
    %96 = arith.select %21, %91, %95 : vector<8x256xi1>, vector<8x256xf32>
    %97 = vector.extract_strided_slice %96 {offsets = [0, 0], sizes = [8, 64], strides = [1, 1]} : vector<8x256xf32> to vector<8x64xf32>
    %98 = vector.extract_strided_slice %96 {offsets = [0, 64], sizes = [8, 64], strides = [1, 1]} : vector<8x256xf32> to vector<8x64xf32>
    %99 = vector.extract_strided_slice %96 {offsets = [0, 128], sizes = [8, 64], strides = [1, 1]} : vector<8x256xf32> to vector<8x64xf32>
    %100 = vector.extract_strided_slice %96 {offsets = [0, 192], sizes = [8, 64], strides = [1, 1]} : vector<8x256xf32> to vector<8x64xf32>
    %101 = arith.mulf %98, %84 : vector<8x64xf32>
    %102 = arith.mulf %97, %99 : vector<8x64xf32>
    %103 = arith.addf %101, %102 : vector<8x64xf32>
    %104 = math.tanh %103 : vector<8x64xf32>
    %105 = arith.mulf %100, %104 : vector<8x64xf32>
    %106 = vector.extract_strided_slice %14 {offsets = [32, 0], sizes = [8, 256], strides = [1, 1]} : vector<72x256xf32> to vector<8x256xf32>
    %cst_25 = arith.constant dense<0.000000e+00> : vector<8x256xf32>
    %107 = tpu.matmul %105, %15, %cst_25 {dimension_numbers = #tpu.dot_dimension_numbers<[1], [0], [0], [1], [0, 0, 1, 1], [], []>} : vector<8x64xf32>, vector<64x256xf32>, vector<8x256xf32> -> vector<8x256xf32>
    %108 = arith.addf %106, %107 : vector<8x256xf32>
    %109 = arith.mulf %108, %24 : vector<8x256xf32>
    %110 = math.tanh %109 : vector<8x256xf32>
    %cst_26 = arith.constant 5.000000e-01 : f32
    %111 = vector.broadcast %cst_26 : f32 to vector<8x256xf32>
    %112 = arith.mulf %111, %110 : vector<8x256xf32>
    %cst_27 = arith.constant 5.000000e-01 : f32
    %113 = vector.broadcast %cst_27 : f32 to vector<8x256xf32>
    %114 = arith.addf %112, %113 : vector<8x256xf32>
    %115 = arith.select %21, %110, %114 : vector<8x256xi1>, vector<8x256xf32>
    %116 = vector.extract_strided_slice %115 {offsets = [0, 0], sizes = [8, 64], strides = [1, 1]} : vector<8x256xf32> to vector<8x64xf32>
    %117 = vector.extract_strided_slice %115 {offsets = [0, 64], sizes = [8, 64], strides = [1, 1]} : vector<8x256xf32> to vector<8x64xf32>
    %118 = vector.extract_strided_slice %115 {offsets = [0, 128], sizes = [8, 64], strides = [1, 1]} : vector<8x256xf32> to vector<8x64xf32>
    %119 = vector.extract_strided_slice %115 {offsets = [0, 192], sizes = [8, 64], strides = [1, 1]} : vector<8x256xf32> to vector<8x64xf32>
    %120 = arith.mulf %117, %103 : vector<8x64xf32>
    %121 = arith.mulf %116, %118 : vector<8x64xf32>
    %122 = arith.addf %120, %121 : vector<8x64xf32>
    %123 = math.tanh %122 : vector<8x64xf32>
    %124 = arith.mulf %119, %123 : vector<8x64xf32>
    %125 = vector.extract_strided_slice %14 {offsets = [40, 0], sizes = [8, 256], strides = [1, 1]} : vector<72x256xf32> to vector<8x256xf32>
    %cst_28 = arith.constant dense<0.000000e+00> : vector<8x256xf32>
    %126 = tpu.matmul %124, %15, %cst_28 {dimension_numbers = #tpu.dot_dimension_numbers<[1], [0], [0], [1], [0, 0, 1, 1], [], []>} : vector<8x64xf32>, vector<64x256xf32>, vector<8x256xf32> -> vector<8x256xf32>
    %127 = arith.addf %125, %126 : vector<8x256xf32>
    %128 = arith.mulf %127, %24 : vector<8x256xf32>
    %129 = math.tanh %128 : vector<8x256xf32>
    %cst_29 = arith.constant 5.000000e-01 : f32
    %130 = vector.broadcast %cst_29 : f32 to vector<8x256xf32>
    %131 = arith.mulf %130, %129 : vector<8x256xf32>
    %cst_30 = arith.constant 5.000000e-01 : f32
    %132 = vector.broadcast %cst_30 : f32 to vector<8x256xf32>
    %133 = arith.addf %131, %132 : vector<8x256xf32>
    %134 = arith.select %21, %129, %133 : vector<8x256xi1>, vector<8x256xf32>
    %135 = vector.extract_strided_slice %134 {offsets = [0, 0], sizes = [8, 64], strides = [1, 1]} : vector<8x256xf32> to vector<8x64xf32>
    %136 = vector.extract_strided_slice %134 {offsets = [0, 64], sizes = [8, 64], strides = [1, 1]} : vector<8x256xf32> to vector<8x64xf32>
    %137 = vector.extract_strided_slice %134 {offsets = [0, 128], sizes = [8, 64], strides = [1, 1]} : vector<8x256xf32> to vector<8x64xf32>
    %138 = vector.extract_strided_slice %134 {offsets = [0, 192], sizes = [8, 64], strides = [1, 1]} : vector<8x256xf32> to vector<8x64xf32>
    %139 = arith.mulf %136, %122 : vector<8x64xf32>
    %140 = arith.mulf %135, %137 : vector<8x64xf32>
    %141 = arith.addf %139, %140 : vector<8x64xf32>
    %142 = math.tanh %141 : vector<8x64xf32>
    %143 = arith.mulf %138, %142 : vector<8x64xf32>
    %144 = vector.extract_strided_slice %14 {offsets = [48, 0], sizes = [8, 256], strides = [1, 1]} : vector<72x256xf32> to vector<8x256xf32>
    %cst_31 = arith.constant dense<0.000000e+00> : vector<8x256xf32>
    %145 = tpu.matmul %143, %15, %cst_31 {dimension_numbers = #tpu.dot_dimension_numbers<[1], [0], [0], [1], [0, 0, 1, 1], [], []>} : vector<8x64xf32>, vector<64x256xf32>, vector<8x256xf32> -> vector<8x256xf32>
    %146 = arith.addf %144, %145 : vector<8x256xf32>
    %147 = arith.mulf %146, %24 : vector<8x256xf32>
    %148 = math.tanh %147 : vector<8x256xf32>
    %cst_32 = arith.constant 5.000000e-01 : f32
    %149 = vector.broadcast %cst_32 : f32 to vector<8x256xf32>
    %150 = arith.mulf %149, %148 : vector<8x256xf32>
    %cst_33 = arith.constant 5.000000e-01 : f32
    %151 = vector.broadcast %cst_33 : f32 to vector<8x256xf32>
    %152 = arith.addf %150, %151 : vector<8x256xf32>
    %153 = arith.select %21, %148, %152 : vector<8x256xi1>, vector<8x256xf32>
    %154 = vector.extract_strided_slice %153 {offsets = [0, 0], sizes = [8, 64], strides = [1, 1]} : vector<8x256xf32> to vector<8x64xf32>
    %155 = vector.extract_strided_slice %153 {offsets = [0, 64], sizes = [8, 64], strides = [1, 1]} : vector<8x256xf32> to vector<8x64xf32>
    %156 = vector.extract_strided_slice %153 {offsets = [0, 128], sizes = [8, 64], strides = [1, 1]} : vector<8x256xf32> to vector<8x64xf32>
    %157 = vector.extract_strided_slice %153 {offsets = [0, 192], sizes = [8, 64], strides = [1, 1]} : vector<8x256xf32> to vector<8x64xf32>
    %158 = arith.mulf %155, %141 : vector<8x64xf32>
    %159 = arith.mulf %154, %156 : vector<8x64xf32>
    %160 = arith.addf %158, %159 : vector<8x64xf32>
    %161 = math.tanh %160 : vector<8x64xf32>
    %162 = arith.mulf %157, %161 : vector<8x64xf32>
    %163 = vector.extract_strided_slice %14 {offsets = [56, 0], sizes = [8, 256], strides = [1, 1]} : vector<72x256xf32> to vector<8x256xf32>
    %cst_34 = arith.constant dense<0.000000e+00> : vector<8x256xf32>
    %164 = tpu.matmul %162, %15, %cst_34 {dimension_numbers = #tpu.dot_dimension_numbers<[1], [0], [0], [1], [0, 0, 1, 1], [], []>} : vector<8x64xf32>, vector<64x256xf32>, vector<8x256xf32> -> vector<8x256xf32>
    %165 = arith.addf %163, %164 : vector<8x256xf32>
    %166 = arith.mulf %165, %24 : vector<8x256xf32>
    %167 = math.tanh %166 : vector<8x256xf32>
    %cst_35 = arith.constant 5.000000e-01 : f32
    %168 = vector.broadcast %cst_35 : f32 to vector<8x256xf32>
    %169 = arith.mulf %168, %167 : vector<8x256xf32>
    %cst_36 = arith.constant 5.000000e-01 : f32
    %170 = vector.broadcast %cst_36 : f32 to vector<8x256xf32>
    %171 = arith.addf %169, %170 : vector<8x256xf32>
    %172 = arith.select %21, %167, %171 : vector<8x256xi1>, vector<8x256xf32>
    %173 = vector.extract_strided_slice %172 {offsets = [0, 0], sizes = [8, 64], strides = [1, 1]} : vector<8x256xf32> to vector<8x64xf32>
    %174 = vector.extract_strided_slice %172 {offsets = [0, 64], sizes = [8, 64], strides = [1, 1]} : vector<8x256xf32> to vector<8x64xf32>
    %175 = vector.extract_strided_slice %172 {offsets = [0, 128], sizes = [8, 64], strides = [1, 1]} : vector<8x256xf32> to vector<8x64xf32>
    %176 = vector.extract_strided_slice %172 {offsets = [0, 192], sizes = [8, 64], strides = [1, 1]} : vector<8x256xf32> to vector<8x64xf32>
    %177 = arith.mulf %174, %160 : vector<8x64xf32>
    %178 = arith.mulf %173, %175 : vector<8x64xf32>
    %179 = arith.addf %177, %178 : vector<8x64xf32>
    %180 = math.tanh %179 : vector<8x64xf32>
    %181 = arith.mulf %176, %180 : vector<8x64xf32>
    %182 = vector.extract_strided_slice %14 {offsets = [64, 0], sizes = [8, 256], strides = [1, 1]} : vector<72x256xf32> to vector<8x256xf32>
    %cst_37 = arith.constant dense<0.000000e+00> : vector<8x256xf32>
    %183 = tpu.matmul %181, %15, %cst_37 {dimension_numbers = #tpu.dot_dimension_numbers<[1], [0], [0], [1], [0, 0, 1, 1], [], []>} : vector<8x64xf32>, vector<64x256xf32>, vector<8x256xf32> -> vector<8x256xf32>
    %184 = arith.addf %182, %183 : vector<8x256xf32>
    %185 = arith.mulf %184, %24 : vector<8x256xf32>
    %186 = math.tanh %185 : vector<8x256xf32>
    %cst_38 = arith.constant 5.000000e-01 : f32
    %187 = vector.broadcast %cst_38 : f32 to vector<8x256xf32>
    %188 = arith.mulf %187, %186 : vector<8x256xf32>
    %cst_39 = arith.constant 5.000000e-01 : f32
    %189 = vector.broadcast %cst_39 : f32 to vector<8x256xf32>
    %190 = arith.addf %188, %189 : vector<8x256xf32>
    %191 = arith.select %21, %186, %190 : vector<8x256xi1>, vector<8x256xf32>
    %192 = vector.extract_strided_slice %191 {offsets = [0, 0], sizes = [8, 64], strides = [1, 1]} : vector<8x256xf32> to vector<8x64xf32>
    %193 = vector.extract_strided_slice %191 {offsets = [0, 64], sizes = [8, 64], strides = [1, 1]} : vector<8x256xf32> to vector<8x64xf32>
    %194 = vector.extract_strided_slice %191 {offsets = [0, 128], sizes = [8, 64], strides = [1, 1]} : vector<8x256xf32> to vector<8x64xf32>
    %195 = vector.extract_strided_slice %191 {offsets = [0, 192], sizes = [8, 64], strides = [1, 1]} : vector<8x256xf32> to vector<8x64xf32>
    %196 = arith.mulf %193, %179 : vector<8x64xf32>
    %197 = arith.mulf %192, %194 : vector<8x64xf32>
    %198 = arith.addf %196, %197 : vector<8x64xf32>
    %199 = math.tanh %198 : vector<8x64xf32>
    %200 = arith.mulf %195, %199 : vector<8x64xf32>
    %201 = arith.select %27, %179, %198 : vector<8x64xi1>, vector<8x64xf32>
    %202 = arith.select %27, %181, %200 : vector<8x64xi1>, vector<8x64xf32>
    %203 = vector.extract_strided_slice %202 {offsets = [0, 0], sizes = [8, 32], strides = [1, 1]} : vector<8x64xf32> to vector<8x32xf32>
    %204 = vector.extract_strided_slice %202 {offsets = [0, 32], sizes = [8, 32], strides = [1, 1]} : vector<8x64xf32> to vector<8x32xf32>
    %205 = vector.extract_strided_slice %201 {offsets = [0, 0], sizes = [8, 32], strides = [1, 1]} : vector<8x64xf32> to vector<8x32xf32>
    %206 = vector.extract_strided_slice %201 {offsets = [0, 32], sizes = [8, 32], strides = [1, 1]} : vector<8x64xf32> to vector<8x32xf32>
    %207 = tpu.concatenate %203, %205, %204, %206 in 1 : vector<8x32xf32>, vector<8x32xf32>, vector<8x32xf32>, vector<8x32xf32> -> vector<8x128xf32>
    %208 = math.tanh %207 : vector<8x128xf32>
    %c32_40 = arith.constant 32 : index
    %c0_41 = arith.constant 0 : index
    %209 = vector.load %arg1[%c32_40, %c0_41] : memref<168x32xf32, #tpu.memory_space<vmem>>, vector<128x32xf32>
    %c160 = arith.constant 160 : index
    %c0_42 = arith.constant 0 : index
    %210 = vector.load %arg1[%c160, %c0_42] : memref<168x32xf32, #tpu.memory_space<vmem>>, vector<1x32xf32>
    %cst_43 = arith.constant dense<0.000000e+00> : vector<8x32xf32>
    %211 = tpu.matmul %208, %209, %cst_43 {dimension_numbers = #tpu.dot_dimension_numbers<[1], [0], [0], [1], [0, 0, 1, 1], [], []>} : vector<8x128xf32>, vector<128x32xf32>, vector<8x32xf32> -> vector<8x32xf32>
    %212 = vector.broadcast %210 : vector<1x32xf32> to vector<8x32xf32>
    %213 = arith.addf %211, %212 : vector<8x32xf32>
    %214 = vector.extract_strided_slice %213 {offsets = [0, 0], sizes = [2, 32], strides = [1, 1]} : vector<8x32xf32> to vector<2x32xf32>
    %c0_44 = arith.constant 0 : index
    %c0_45 = arith.constant 0 : index
    %215 = vector.load %arg3[%c0_44, %c0_45] : memref<2x32xf32, #tpu.memory_space<vmem>>, vector<2x32xf32>
    tpu.vector_store %arg3[%c0_44, %c0_45], %214 {strides = array<i32>} : memref<2x32xf32, #tpu.memory_space<vmem>>, vector<2x32xf32>,
    return
  }
}

</mosaic_0001>

<llo_original>
// kernel: qst_encoder_forward.1
$region0: #{qst_encoder_forward.1}
  #allocation0 [shape = 'u32[]', space=smem, size = 0x4, offset = 0x4, fixed_abs, tag = 'smem constant byte address 0x4 - core index']
  #allocation1 [shape = 'u32[72,128]{1,0:T(1,128)}', space=vmem, size = 0x9000, scoped, tag = 'internal scratch']
  %s0 = inlined_call_operand.vmem [shape: s32[72,1], index: 0, kind: input, shape index: {}]
  %s1 = inlined_call_operand.vmem [shape: f32[168,32], index: 1, kind: input, shape index: {}]
  %s2 = inlined_call_operand.vmem [shape: f32[104,256], index: 2, kind: input, shape index: {}]
  %s3 = inlined_call_operand.hbm [shape: f32[2,32], index: 3, kind: output, shape index: {}]
  %s4 = sld [smem:[#allocation0]]
  $region22: #{qst_encoder_forward.1} parent=0
    _
  %s6 = ssub.s32 1, %s4
  %s7 = scalar_select 0, %s6, %s4
  $region1: #{qst_encoder_forward.1} parent=0
    #allocation2 [shape = 'u8[1024]{0}', space=vmem, size = 0x400, scoped, tag = 'output window, operand 0, single buffered']
    #allocation3 [shape = 's32[1]{0}', space=sflag, size = 0x4, scoped, tag = 'scoped memory for qst_encoder_forward.1']
    %8 = vsyncpa [#allocation3], 0
    // Predicated region
    $region2: #{qst_encoder_forward.1} parent=1 // pred_check
      _
    $region3: #{qst_encoder_forward.1} parent=1 // pred_check_branch
      %10 = sbr.rel (0) target = $region5
    $region4: #{qst_encoder_forward.1} parent=1 // pred_region
      _
    $region5: #{qst_encoder_forward.1} parent=1 // pred_fallthru
      _
    // Predicated region
    $region6: #{qst_encoder_forward.1} parent=1 // pred_check
      _
    $region7: #{qst_encoder_forward.1} parent=1 // pred_check_branch
      %12 = sbr.rel (0) target = $region9
    $region8: #{qst_encoder_forward.1} parent=1 // pred_region
      _
    $region9: #{qst_encoder_forward.1} parent=1 // pred_fallthru
      _
    // Predicated region
    $region10: #{qst_encoder_forward.1} parent=1 // pred_check
      _
    $region11: #{qst_encoder_forward.1} parent=1 // pred_check_branch
      %14 = sbr.rel (0) target = $region13
    $region12: #{qst_encoder_forward.1} parent=1 // pred_region
      _
    $region13: #{qst_encoder_forward.1} parent=1 // pred_fallthru
      _
    %v15 = vld [vmem:[%s0] sm:$0xff]
    %v16 = vld [vmem:[%s0 + $0x8] sm:$0xff]
    %v17 = vld [vmem:[%s0 + $0x10] sm:$0xff]
    %v18 = vld [vmem:[%s0 + $0x18] sm:$0xff]
    %v19 = vld [vmem:[%s0 + $0x20] sm:$0xff]
    %v20 = vld [vmem:[%s0 + $0x28] sm:$0xff]
    %v21 = vld [vmem:[%s0 + $0x30] sm:$0xff]
    %v22 = vld [vmem:[%s0 + $0x38] sm:$0xff]
    %v23 = vld [vmem:[%s0 + $0x40] sm:$0xff]
    %v24 = vlaneseq
    %v25 = vand.u32 %v24, 127
    %26 = vset.pattern.permute.xlu0 0
    %27 = vperm.xlu0 %26, %v15
    %v28 = vpop.permute.xlu0 %27
    %29 = vset.pattern.permute.xlu0 0
    %30 = vperm.xlu0 %29, %v16
    %v31 = vpop.permute.xlu0 %30
    %32 = vset.pattern.permute.xlu0 0
    %33 = vperm.xlu0 %32, %v17
    %v34 = vpop.permute.xlu0 %33
    %35 = vset.pattern.permute.xlu0 0
    %36 = vperm.xlu0 %35, %v18
    %v37 = vpop.permute.xlu0 %36
    %38 = vset.pattern.permute.xlu0 0
    %39 = vperm.xlu0 %38, %v19
    %v40 = vpop.permute.xlu0 %39
    %41 = vset.pattern.permute.xlu0 0
    %42 = vperm.xlu0 %41, %v20
    %v43 = vpop.permute.xlu0 %42
    %44 = vset.pattern.permute.xlu0 0
    %45 = vperm.xlu0 %44, %v21
    %v46 = vpop.permute.xlu0 %45
    %47 = vset.pattern.permute.xlu0 0
    %48 = vperm.xlu0 %47, %v22
    %v49 = vpop.permute.xlu0 %48
    %50 = vset.pattern.permute.xlu0 0
    %51 = vperm.xlu0 %50, %v23
    %v52 = vpop.permute.xlu0 %51
    %vm53 = vcmp.eq.s32.totalorder %v25, %v28
    %vm54 = vcmp.eq.s32.totalorder %v25, %v31
    %vm55 = vcmp.eq.s32.totalorder %v25, %v34
    %vm56 = vcmp.eq.s32.totalorder %v25, %v37
    %vm57 = vcmp.eq.s32.totalorder %v25, %v40
    %vm58 = vcmp.eq.s32.totalorder %v25, %v43
    %vm59 = vcmp.eq.s32.totalorder %v25, %v46
    %vm60 = vcmp.eq.s32.totalorder %v25, %v49
    %vm61 = vcmp.eq.s32.totalorder %v25, %v52
    %v62 = vsel %vm53, 1.0, 0.0
    %v63 = vsel %vm54, 1.0, 0.0
    %v64 = vsel %vm55, 1.0, 0.0
    %v65 = vsel %vm56, 1.0, 0.0
    %v66 = vsel %vm57, 1.0, 0.0
    %v67 = vsel %vm58, 1.0, 0.0
    %v68 = vsel %vm59, 1.0, 0.0
    %v69 = vsel %vm60, 1.0, 0.0
    %v70 = vsel %vm61, 1.0, 0.0
    %v71 = vld [vmem:[%s1] sm:$0xff]
    %v72 = vld [vmem:[%s1 + $0x8] sm:$0xff]
    %v73 = vld [vmem:[%s1 + $0x10] sm:$0xff]
    %v74 = vld [vmem:[%s1 + $0x18] sm:$0xff]
    %vm75 = vcmask 261120
    %v77 = vsel %vm75, %v62, 0
    %v80 = vsel %vm75, %v63, 0
    %v83 = vsel %vm75, %v64, 0
    %v86 = vsel %vm75, %v65, 0
    %v89 = vsel %vm75, %v66, 0
    %v92 = vsel %vm75, %v67, 0
    %v95 = vsel %vm75, %v68, 0
    %v98 = vsel %vm75, %v69, 0
    %v101 = vsel %vm75, %v70, 0
    %103 = vmatpush.msra.mxu0 0.0
    %104 = vmatpush.msra.mxu0 0.0
    %105 = vmatpush.msra.mxu0 0.0
    %106 = vmatpush.msra.mxu0 0.0
    %107 = vmatpush.msra.mxu0 0.0
    %108 = vmatpush.msra.mxu0 0.0
    %109 = vmatpush.msra.mxu0 0.0
    %110 = vmatpush.msra.mxu0 0.0
    %111 = vmatpush.msra.mxu0 0.0
    %112 = vmatpush.msra.mxu0 0.0
    %113 = vmatpush.msra.mxu0 0.0
    %114 = vmatpush.msra.mxu0 0.0
    %115 = vmatpush.msra.mxu0 %v74
    %116 = vmatpush.msra.mxu0 %v73
    %117 = vmatpush.msra.mxu0 %v72
    %118 = vmatpush.msra.mxu0 %v71
    %119 = vmatmul.f32.gmra.mxu0 %v77
    %v120 = vpop.f32.mrf.mxu0
    %v121 = vadd.f32 0.0, %v120
    %122 = vmatmul.f32.gmra.mxu0 %v80
    %v123 = vpop.f32.mrf.mxu0
    %v124 = vadd.f32 0.0, %v123
    %125 = vmatmul.f32.gmra.mxu0 %v83
    %v126 = vpop.f32.mrf.mxu0
    %v127 = vadd.f32 0.0, %v126
    %128 = vmatmul.f32.gmra.mxu0 %v86
    %v129 = vpop.f32.mrf.mxu0
    %v130 = vadd.f32 0.0, %v129
    %131 = vmatmul.f32.gmra.mxu0 %v89
    %v132 = vpop.f32.mrf.mxu0
    %v133 = vadd.f32 0.0, %v132
    %134 = vmatmul.f32.gmra.mxu0 %v92
    %v135 = vpop.f32.mrf.mxu0
    %v136 = vadd.f32 0.0, %v135
    %137 = vmatmul.f32.gmra.mxu0 %v95
    %v138 = vpop.f32.mrf.mxu0
    %v139 = vadd.f32 0.0, %v138
    %140 = vmatmul.f32.gmra.mxu0 %v98
    %v141 = vpop.f32.mrf.mxu0
    %v142 = vadd.f32 0.0, %v141
    %143 = vmatmul.f32.gmra.mxu0 %v101
    %v144 = vpop.f32.mrf.mxu0
    %v145 = vadd.f32 0.0, %v144
    %146 = vdwg.mxu0
    %v147 = vtanh.pop %v121
    %v148 = vtanh.pop %v124
    %v149 = vtanh.pop %v127
    %v150 = vtanh.pop %v130
    %v151 = vtanh.pop %v133
    %v152 = vtanh.pop %v136
    %v153 = vtanh.pop %v139
    %v154 = vtanh.pop %v142
    %v155 = vtanh.pop %v145
    %v156 = vld [vmem:[%s2] sm:$0xff]
    %v157 = vld [vmem:[%s2 + $0x8] sm:$0xff]
    %v158 = vld [vmem:[%s2 + $0x10] sm:$0xff]
    %v159 = vld [vmem:[%s2 + $0x18] sm:$0xff]
    %v160 = vld [vmem:[%s2 + $0x20] sm:$0xff]
    %v161 = vld [vmem:[%s2 + $0x28] sm:$0xff]
    %v162 = vld [vmem:[%s2 + $0x30] sm:$0xff]
    %v163 = vld [vmem:[%s2 + $0x38] sm:$0xff]
    %s164 = scalar_lea.vmem %s2, 64
    %v165 = vld [vmem:[%s164] ss:$8 sm:$0x3]
    %v167 = vperm.slane %v165, 0
    %v168 = vperm.slane %v165, 1
    %v172 = vsel %vm75, %v147, 0
    %v175 = vsel %vm75, %v148, 0
    %v178 = vsel %vm75, %v149, 0
    %v181 = vsel %vm75, %v150, 0
    %v184 = vsel %vm75, %v151, 0
    %v187 = vsel %vm75, %v152, 0
    %v190 = vsel %vm75, %v153, 0
    %v193 = vsel %vm75, %v154, 0
    %v196 = vsel %vm75, %v155, 0
    %198 = vmatpush.msra.mxu0 0.0
    %199 = vmatpush.msra.mxu0 0.0
    %200 = vmatpush.msra.mxu0 0.0
    %201 = vmatpush.msra.mxu0 0.0
    %202 = vmatpush.msra.mxu0 0.0
    %203 = vmatpush.msra.mxu0 0.0
    %204 = vmatpush.msra.mxu0 0.0
    %205 = vmatpush.msra.mxu0 0.0
    %206 = vmatpush.msra.mxu0 0.0
    %207 = vmatpush.msra.mxu0 0.0
    %208 = vmatpush.msra.mxu0 0.0
    %209 = vmatpush.msra.mxu0 0.0
    %210 = vmatpush.msra.mxu0 %v162
    %211 = vmatpush.msra.mxu0 %v160
    %212 = vmatpush.msra.mxu0 %v158
    %213 = vmatpush.msra.mxu0 %v156
    %214 = vmatmul.f32.gmra.mxu0 %v172
    %v215 = vpop.f32.mrf.mxu0
    %v216 = vadd.f32 %v167, %v215
    %217 = vmatmul.f32.gmra.mxu0 %v175
    %v218 = vpop.f32.mrf.mxu0
    %v219 = vadd.f32 %v167, %v218
    %220 = vmatmul.f32.gmra.mxu0 %v178
    %v221 = vpop.f32.mrf.mxu0
    %v222 = vadd.f32 %v167, %v221
    %223 = vmatmul.f32.gmra.mxu0 %v181
    %v224 = vpop.f32.mrf.mxu0
    %v225 = vadd.f32 %v167, %v224
    %226 = vmatmul.f32.gmra.mxu0 %v184
    %v227 = vpop.f32.mrf.mxu0
    %v228 = vadd.f32 %v167, %v227
    %229 = vmatmul.f32.gmra.mxu0 %v187
    %v230 = vpop.f32.mrf.mxu0
    %v231 = vadd.f32 %v167, %v230
    %232 = vmatmul.f32.gmra.mxu0 %v190
    %v233 = vpop.f32.mrf.mxu0
    %v234 = vadd.f32 %v167, %v233
    %235 = vmatmul.f32.gmra.mxu0 %v193
    %v236 = vpop.f32.mrf.mxu0
    %v237 = vadd.f32 %v167, %v236
    %238 = vmatmul.f32.gmra.mxu0 %v196
    %v239 = vpop.f32.mrf.mxu0
    %v240 = vadd.f32 %v167, %v239
    %241 = vdwg.mxu0
    %242 = vmatpush.msra.mxu0 0.0
    %243 = vmatpush.msra.mxu0 0.0
    %244 = vmatpush.msra.mxu0 0.0
    %245 = vmatpush.msra.mxu0 0.0
    %246 = vmatpush.msra.mxu0 0.0
    %247 = vmatpush.msra.mxu0 0.0
    %248 = vmatpush.msra.mxu0 0.0
    %249 = vmatpush.msra.mxu0 0.0
    %250 = vmatpush.msra.mxu0 0.0
    %251 = vmatpush.msra.mxu0 0.0
    %252 = vmatpush.msra.mxu0 0.0
    %253 = vmatpush.msra.mxu0 0.0
    %254 = vmatpush.msra.mxu0 %v163
    %255 = vmatpush.msra.mxu0 %v161
    %256 = vmatpush.msra.mxu0 %v159
    %257 = vmatpush.msra.mxu0 %v157
    %258 = vmatmul.f32.gmra.mxu0 %v172
    %v259 = vpop.f32.mrf.mxu0
    %v260 = vadd.f32 %v168, %v259
    %261 = vmatmul.f32.gmra.mxu0 %v175
    %v262 = vpop.f32.mrf.mxu0
    %v263 = vadd.f32 %v168, %v262
    %264 = vmatmul.f32.gmra.mxu0 %v178
    %v265 = vpop.f32.mrf.mxu0
    %v266 = vadd.f32 %v168, %v265
    %267 = vmatmul.f32.gmra.mxu0 %v181
    %v268 = vpop.f32.mrf.mxu0
    %v269 = vadd.f32 %v168, %v268
    %270 = vmatmul.f32.gmra.mxu0 %v184
    %v271 = vpop.f32.mrf.mxu0
    %v272 = vadd.f32 %v168, %v271
    %273 = vmatmul.f32.gmra.mxu0 %v187
    %v274 = vpop.f32.mrf.mxu0
    %v275 = vadd.f32 %v168, %v274
    %276 = vmatmul.f32.gmra.mxu0 %v190
    %v277 = vpop.f32.mrf.mxu0
    %v278 = vadd.f32 %v168, %v277
    %279 = vmatmul.f32.gmra.mxu0 %v193
    %v280 = vpop.f32.mrf.mxu0
    %v281 = vadd.f32 %v168, %v280
    %282 = vmatmul.f32.gmra.mxu0 %v196
    %v283 = vpop.f32.mrf.mxu0
    %v284 = vadd.f32 %v168, %v283
    %285 = vdwg.mxu0
    %v286 = vld [vmem:[%s2 + $0x50] sm:$0xff]
    %v287 = vld [vmem:[%s2 + $0x58] sm:$0xff]
    %v288 = vld [vmem:[%s2 + $0x60] sm:$0xff]
    %v289 = vld [vmem:[%s2 + $0x68] sm:$0xff]
    %v290 = vld [vmem:[%s2 + $0x70] sm:$0xff]
    %v291 = vld [vmem:[%s2 + $0x78] sm:$0xff]
    %v292 = vld [vmem:[%s2 + $0x80] sm:$0xff]
    %v293 = vld [vmem:[%s2 + $0x88] sm:$0xff]
    %v294 = vld [vmem:[%s2 + $0x90] sm:$0xff]
    %v295 = vld [vmem:[%s2 + $0x98] sm:$0xff]
    %v296 = vld [vmem:[%s2 + $0xa0] sm:$0xff]
    %v297 = vld [vmem:[%s2 + $0xa8] sm:$0xff]
    %v298 = vld [vmem:[%s2 + $0xb0] sm:$0xff]
    %v299 = vld [vmem:[%s2 + $0xb8] sm:$0xff]
    %v300 = vld [vmem:[%s2 + $0xc0] sm:$0xff]
    %v301 = vld [vmem:[%s2 + $0xc8] sm:$0xff]
    %v302 = vadd.s32 %v25, 128
    %vm303 = vcmp.ge.s32.totalorder %v25, 128
    %vm304 = vcmp.ge.s32.totalorder %v302, 128
    %vm305 = vcmp.lt.s32.totalorder %v25, 192
    %vm306 = vcmp.lt.s32.totalorder %v302, 192
    %vm307 = vmand %vm303, %vm305
    %vm308 = vmand %vm304, %vm306
    %v309 = vsel %vm307, 1.0, 0.5
    %v310 = vsel %vm308, 1.0, 0.5
    %vm311 = vcmp.lt.s32.totalorder %v25, 32
    %v312 = vmul.f32 %v216, %v309
    %v313 = vmul.f32 %v260, %v310
    %v314 = vtanh.pop %v312
    %v315 = vtanh.pop %v313
    %v316 = vmul.f32 %v314, 0.5
    %v317 = vmul.f32 %v315, 0.5
    %v318 = vadd.f32 %v316, 0.5
    %v319 = vadd.f32 %v317, 0.5
    %v320 = vsel %vm307, %v314, %v318
    %v321 = vsel %vm308, %v315, %v319
    %v322 = vmul.f32 %v320, 0.0
    %v323 = vmul.f32 %v320, %v321
    %325 = vrot.lane.b32.xlu0 %v323, 64
    %v326 = vpop.permute.xlu0 %325
    %v328 = vadd.f32 %v322, %v326
    %v329 = vtanh.pop %v328
    %v330 = vmul.f32 %v321, %v329
    %332 = vrot.lane.b32.xlu0 %v328, 64
    %v333 = vpop.permute.xlu0 %332
    %v335 = vsel %vm311, %v333, 0.0
    %337 = vrot.lane.b32.xlu0 %v330, 64
    %v338 = vpop.permute.xlu0 %337
    %v340 = vsel %vm311, %v338, 0.0
    %vm341 = vcmask 523264
    %v343 = vsel %vm341, %v340, 0
    %345 = vmatpush.msra.mxu0 0.0
    %346 = vmatpush.msra.mxu0 0.0
    %347 = vmatpush.msra.mxu0 0.0
    %348 = vmatpush.msra.mxu0 0.0
    %349 = vmatpush.msra.mxu0 0.0
    %350 = vmatpush.msra.mxu0 0.0
    %351 = vmatpush.msra.mxu0 0.0
    %352 = vmatpush.msra.mxu0 0.0
    %353 = vmatpush.msra.mxu0 %v300
    %354 = vmatpush.msra.mxu0 %v298
    %355 = vmatpush.msra.mxu0 %v296
    %356 = vmatpush.msra.mxu0 %v294
    %357 = vmatpush.msra.mxu0 %v292
    %358 = vmatpush.msra.mxu0 %v290
    %359 = vmatpush.msra.mxu0 %v288
    %360 = vmatpush.msra.mxu0 %v286
    %361 = vmatmul.f32.gmra.mxu0 %v343
    %v362 = vpop.f32.mrf.mxu0
    %v363 = vadd.f32 0.0, %v362
    %364 = vdwg.mxu0
    %365 = vmatpush.msra.mxu0 0.0
    %366 = vmatpush.msra.mxu0 0.0
    %367 = vmatpush.msra.mxu0 0.0
    %368 = vmatpush.msra.mxu0 0.0
    %369 = vmatpush.msra.mxu0 0.0
    %370 = vmatpush.msra.mxu0 0.0
    %371 = vmatpush.msra.mxu0 0.0
    %372 = vmatpush.msra.mxu0 0.0
    %373 = vmatpush.msra.mxu0 %v301
    %374 = vmatpush.msra.mxu0 %v299
    %375 = vmatpush.msra.mxu0 %v297
    %376 = vmatpush.msra.mxu0 %v295
    %377 = vmatpush.msra.mxu0 %v293
    %378 = vmatpush.msra.mxu0 %v291
    %379 = vmatpush.msra.mxu0 %v289
    %380 = vmatpush.msra.mxu0 %v287
    %381 = vmatmul.f32.gmra.mxu0 %v343
    %v382 = vpop.f32.mrf.mxu0
    %v383 = vadd.f32 0.0, %v382
    %384 = vdwg.mxu0
    %v385 = vadd.f32 %v219, %v363
    %v386 = vadd.f32 %v263, %v383
    %v387 = vmul.f32 %v385, %v309
    %v388 = vmul.f32 %v386, %v310
    %v389 = vtanh.pop %v387
    %v390 = vtanh.pop %v388
    %v391 = vmul.f32 %v389, 0.5
    %v392 = vmul.f32 %v390, 0.5
    %v393 = vadd.f32 %v391, 0.5
    %v394 = vadd.f32 %v392, 0.5
    %v395 = vsel %vm307, %v389, %v393
    %v396 = vsel %vm308, %v390, %v394
    %398 = vrot.lane.b32.xlu0 %v335, 64
    %v399 = vpop.permute.xlu0 %398
    %v401 = vmul.f32 %v395, %v399
    %v402 = vmul.f32 %v395, %v396
    %404 = vrot.lane.b32.xlu0 %v402, 64
    %v405 = vpop.permute.xlu0 %404
    %v407 = vadd.f32 %v401, %v405
    %v408 = vtanh.pop %v407
    %v409 = vmul.f32 %v396, %v408
    %411 = vrot.lane.b32.xlu0 %v409, 64
    %v412 = vpop.permute.xlu0 %411
    %v413 = vsel %vm341, %v412, 0
    %415 = vmatpush.msra.mxu0 0.0
    %416 = vmatpush.msra.mxu0 0.0
    %417 = vmatpush.msra.mxu0 0.0
    %418 = vmatpush.msra.mxu0 0.0
    %419 = vmatpush.msra.mxu0 0.0
    %420 = vmatpush.msra.mxu0 0.0
    %421 = vmatpush.msra.mxu0 0.0
    %422 = vmatpush.msra.mxu0 0.0
    %423 = vmatpush.msra.mxu0 %v300
    %424 = vmatpush.msra.mxu0 %v298
    %425 = vmatpush.msra.mxu0 %v296
    %426 = vmatpush.msra.mxu0 %v294
    %427 = vmatpush.msra.mxu0 %v292
    %428 = vmatpush.msra.mxu0 %v290
    %429 = vmatpush.msra.mxu0 %v288
    %430 = vmatpush.msra.mxu0 %v286
    %431 = vmatmul.f32.gmra.mxu0 %v413
    %v432 = vpop.f32.mrf.mxu0
    %v433 = vadd.f32 0.0, %v432
    %434 = vdwg.mxu0
    %435 = vmatpush.msra.mxu0 0.0
    %436 = vmatpush.msra.mxu0 0.0
    %437 = vmatpush.msra.mxu0 0.0
    %438 = vmatpush.msra.mxu0 0.0
    %439 = vmatpush.msra.mxu0 0.0
    %440 = vmatpush.msra.mxu0 0.0
    %441 = vmatpush.msra.mxu0 0.0
    %442 = vmatpush.msra.mxu0 0.0
    %443 = vmatpush.msra.mxu0 %v301
    %444 = vmatpush.msra.mxu0 %v299
    %445 = vmatpush.msra.mxu0 %v297
    %446 = vmatpush.msra.mxu0 %v295
    %447 = vmatpush.msra.mxu0 %v293
    %448 = vmatpush.msra.mxu0 %v291
    %449 = vmatpush.msra.mxu0 %v289
    %450 = vmatpush.msra.mxu0 %v287
    %451 = vmatmul.f32.gmra.mxu0 %v413
    %v452 = vpop.f32.mrf.mxu0
    %v453 = vadd.f32 0.0, %v452
    %454 = vdwg.mxu0
    %v455 = vadd.f32 %v222, %v433
    %v456 = vadd.f32 %v266, %v453
    %v457 = vmul.f32 %v455, %v309
    %v458 = vmul.f32 %v456, %v310
    %v459 = vtanh.pop %v457
    %v460 = vtanh.pop %v458
    %v461 = vmul.f32 %v459, 0.5
    %v462 = vmul.f32 %v460, 0.5
    %v463 = vadd.f32 %v461, 0.5
    %v464 = vadd.f32 %v462, 0.5
    %v465 = vsel %vm307, %v459, %v463
    %v466 = vsel %vm308, %v460, %v464
    %v467 = vmul.f32 %v465, %v407
    %v468 = vmul.f32 %v465, %v466
    %470 = vrot.lane.b32.xlu0 %v468, 64
    %v471 = vpop.permute.xlu0 %470
    %v473 = vadd.f32 %v467, %v471
    %v474 = vtanh.pop %v473
    %v475 = vmul.f32 %v466, %v474
    %477 = vrot.lane.b32.xlu0 %v475, 64
    %v478 = vpop.permute.xlu0 %477
    %v479 = vsel %vm341, %v478, 0
    %481 = vmatpush.msra.mxu0 0.0
    %482 = vmatpush.msra.mxu0 0.0
    %483 = vmatpush.msra.mxu0 0.0
    %484 = vmatpush.msra.mxu0 0.0
    %485 = vmatpush.msra.mxu0 0.0
    %486 = vmatpush.msra.mxu0 0.0
    %487 = vmatpush.msra.mxu0 0.0
    %488 = vmatpush.msra.mxu0 0.0
    %489 = vmatpush.msra.mxu0 %v300
    %490 = vmatpush.msra.mxu0 %v298
    %491 = vmatpush.msra.mxu0 %v296
    %492 = vmatpush.msra.mxu0 %v294
    %493 = vmatpush.msra.mxu0 %v292
    %494 = vmatpush.msra.mxu0 %v290
    %495 = vmatpush.msra.mxu0 %v288
    %496 = vmatpush.msra.mxu0 %v286
    %497 = vmatmul.f32.gmra.mxu0 %v479
    %v498 = vpop.f32.mrf.mxu0
    %v499 = vadd.f32 0.0, %v498
    %500 = vdwg.mxu0
    %501 = vmatpush.msra.mxu0 0.0
    %502 = vmatpush.msra.mxu0 0.0
    %503 = vmatpush.msra.mxu0 0.0
    %504 = vmatpush.msra.mxu0 0.0
    %505 = vmatpush.msra.mxu0 0.0
    %506 = vmatpush.msra.mxu0 0.0
    %507 = vmatpush.msra.mxu0 0.0
    %508 = vmatpush.msra.mxu0 0.0
    %509 = vmatpush.msra.mxu0 %v301
    %510 = vmatpush.msra.mxu0 %v299
    %511 = vmatpush.msra.mxu0 %v297
    %512 = vmatpush.msra.mxu0 %v295
    %513 = vmatpush.msra.mxu0 %v293
    %514 = vmatpush.msra.mxu0 %v291
    %515 = vmatpush.msra.mxu0 %v289
    %516 = vmatpush.msra.mxu0 %v287
    %517 = vmatmul.f32.gmra.mxu0 %v479
    %v518 = vpop.f32.mrf.mxu0
    %v519 = vadd.f32 0.0, %v518
    %520 = vdwg.mxu0
    %v521 = vadd.f32 %v225, %v499
    %v522 = vadd.f32 %v269, %v519
    %v523 = vmul.f32 %v521, %v309
    %v524 = vmul.f32 %v522, %v310
    %v525 = vtanh.pop %v523
    %v526 = vtanh.pop %v524
    %v527 = vmul.f32 %v525, 0.5
    %v528 = vmul.f32 %v526, 0.5
    %v529 = vadd.f32 %v527, 0.5
    %v530 = vadd.f32 %v528, 0.5
    %v531 = vsel %vm307, %v525, %v529
    %v532 = vsel %vm308, %v526, %v530
    %v533 = vmul.f32 %v531, %v473
    %v534 = vmul.f32 %v531, %v532
    %536 = vrot.lane.b32.xlu0 %v534, 64
    %v537 = vpop.permute.xlu0 %536
    %v539 = vadd.f32 %v533, %v537
    %v540 = vtanh.pop %v539
    %v541 = vmul.f32 %v532, %v540
    %543 = vrot.lane.b32.xlu0 %v541, 64
    %v544 = vpop.permute.xlu0 %543
    %v545 = vsel %vm341, %v544, 0
    %547 = vmatpush.msra.mxu0 0.0
    %548 = vmatpush.msra.mxu0 0.0
    %549 = vmatpush.msra.mxu0 0.0
    %550 = vmatpush.msra.mxu0 0.0
    %551 = vmatpush.msra.mxu0 0.0
    %552 = vmatpush.msra.mxu0 0.0
    %553 = vmatpush.msra.mxu0 0.0
    %554 = vmatpush.msra.mxu0 0.0
    %555 = vmatpush.msra.mxu0 %v300
    %556 = vmatpush.msra.mxu0 %v298
    %557 = vmatpush.msra.mxu0 %v296
    %558 = vmatpush.msra.mxu0 %v294
    %559 = vmatpush.msra.mxu0 %v292
    %560 = vmatpush.msra.mxu0 %v290
    %561 = vmatpush.msra.mxu0 %v288
    %562 = vmatpush.msra.mxu0 %v286
    %563 = vmatmul.f32.gmra.mxu0 %v545
    %v564 = vpop.f32.mrf.mxu0
    %v565 = vadd.f32 0.0, %v564
    %566 = vdwg.mxu0
    %567 = vmatpush.msra.mxu0 0.0
    %568 = vmatpush.msra.mxu0 0.0
    %569 = vmatpush.msra.mxu0 0.0
    %570 = vmatpush.msra.mxu0 0.0
    %571 = vmatpush.msra.mxu0 0.0
    %572 = vmatpush.msra.mxu0 0.0
    %573 = vmatpush.msra.mxu0 0.0
    %574 = vmatpush.msra.mxu0 0.0
    %575 = vmatpush.msra.mxu0 %v301
    %576 = vmatpush.msra.mxu0 %v299
    %577 = vmatpush.msra.mxu0 %v297
    %578 = vmatpush.msra.mxu0 %v295
    %579 = vmatpush.msra.mxu0 %v293
    %580 = vmatpush.msra.mxu0 %v291
    %581 = vmatpush.msra.mxu0 %v289
    %582 = vmatpush.msra.mxu0 %v287
    %583 = vmatmul.f32.gmra.mxu0 %v545
    %v584 = vpop.f32.mrf.mxu0
    %v585 = vadd.f32 0.0, %v584
    %586 = vdwg.mxu0
    %v587 = vadd.f32 %v228, %v565
    %v588 = vadd.f32 %v272, %v585
    %v589 = vmul.f32 %v587, %v309
    %v590 = vmul.f32 %v588, %v310
    %v591 = vtanh.pop %v589
    %v592 = vtanh.pop %v590
    %v593 = vmul.f32 %v591, 0.5
    %v594 = vmul.f32 %v592, 0.5
    %v595 = vadd.f32 %v593, 0.5
    %v596 = vadd.f32 %v594, 0.5
    %v597 = vsel %vm307, %v591, %v595
    %v598 = vsel %vm308, %v592, %v596
    %v599 = vmul.f32 %v597, %v539
    %v600 = vmul.f32 %v597, %v598
    %602 = vrot.lane.b32.xlu0 %v600, 64
    %v603 = vpop.permute.xlu0 %602
    %v605 = vadd.f32 %v599, %v603
    %v606 = vtanh.pop %v605
    %v607 = vmul.f32 %v598, %v606
    %609 = vrot.lane.b32.xlu0 %v607, 64
    %v610 = vpop.permute.xlu0 %609
    %v611 = vsel %vm341, %v610, 0
    %613 = vmatpush.msra.mxu0 0.0
    %614 = vmatpush.msra.mxu0 0.0
    %615 = vmatpush.msra.mxu0 0.0
    %616 = vmatpush.msra.mxu0 0.0
    %617 = vmatpush.msra.mxu0 0.0
    %618 = vmatpush.msra.mxu0 0.0
    %619 = vmatpush.msra.mxu0 0.0
    %620 = vmatpush.msra.mxu0 0.0
    %621 = vmatpush.msra.mxu0 %v300
    %622 = vmatpush.msra.mxu0 %v298
    %623 = vmatpush.msra.mxu0 %v296
    %624 = vmatpush.msra.mxu0 %v294
    %625 = vmatpush.msra.mxu0 %v292
    %626 = vmatpush.msra.mxu0 %v290
    %627 = vmatpush.msra.mxu0 %v288
    %628 = vmatpush.msra.mxu0 %v286
    %629 = vmatmul.f32.gmra.mxu0 %v611
    %v630 = vpop.f32.mrf.mxu0
    %v631 = vadd.f32 0.0, %v630
    %632 = vdwg.mxu0
    %633 = vmatpush.msra.mxu0 0.0
    %634 = vmatpush.msra.mxu0 0.0
    %635 = vmatpush.msra.mxu0 0.0
    %636 = vmatpush.msra.mxu0 0.0
    %637 = vmatpush.msra.mxu0 0.0
    %638 = vmatpush.msra.mxu0 0.0
    %639 = vmatpush.msra.mxu0 0.0
    %640 = vmatpush.msra.mxu0 0.0
    %641 = vmatpush.msra.mxu0 %v301
    %642 = vmatpush.msra.mxu0 %v299
    %643 = vmatpush.msra.mxu0 %v297
    %644 = vmatpush.msra.mxu0 %v295
    %645 = vmatpush.msra.mxu0 %v293
    %646 = vmatpush.msra.mxu0 %v291
    %647 = vmatpush.msra.mxu0 %v289
    %648 = vmatpush.msra.mxu0 %v287
    %649 = vmatmul.f32.gmra.mxu0 %v611
    %v650 = vpop.f32.mrf.mxu0
    %v651 = vadd.f32 0.0, %v650
    %652 = vdwg.mxu0
    %v653 = vadd.f32 %v231, %v631
    %v654 = vadd.f32 %v275, %v651
    %v655 = vmul.f32 %v653, %v309
    %v656 = vmul.f32 %v654, %v310
    %v657 = vtanh.pop %v655
    %v658 = vtanh.pop %v656
    %v659 = vmul.f32 %v657, 0.5
    %v660 = vmul.f32 %v658, 0.5
    %v661 = vadd.f32 %v659, 0.5
    %v662 = vadd.f32 %v660, 0.5
    %v663 = vsel %vm307, %v657, %v661
    %v664 = vsel %vm308, %v658, %v662
    %v665 = vmul.f32 %v663, %v605
    %v666 = vmul.f32 %v663, %v664
    %668 = vrot.lane.b32.xlu0 %v666, 64
    %v669 = vpop.permute.xlu0 %668
    %v671 = vadd.f32 %v665, %v669
    %v672 = vtanh.pop %v671
    %v673 = vmul.f32 %v664, %v672
    %675 = vrot.lane.b32.xlu0 %v673, 64
    %v676 = vpop.permute.xlu0 %675
    %v677 = vsel %vm341, %v676, 0
    %679 = vmatpush.msra.mxu0 0.0
    %680 = vmatpush.msra.mxu0 0.0
    %681 = vmatpush.msra.mxu0 0.0
    %682 = vmatpush.msra.mxu0 0.0
    %683 = vmatpush.msra.mxu0 0.0
    %684 = vmatpush.msra.mxu0 0.0
    %685 = vmatpush.msra.mxu0 0.0
    %686 = vmatpush.msra.mxu0 0.0
    %687 = vmatpush.msra.mxu0 %v300
    %688 = vmatpush.msra.mxu0 %v298
    %689 = vmatpush.msra.mxu0 %v296
    %690 = vmatpush.msra.mxu0 %v294
    %691 = vmatpush.msra.mxu0 %v292
    %692 = vmatpush.msra.mxu0 %v290
    %693 = vmatpush.msra.mxu0 %v288
    %694 = vmatpush.msra.mxu0 %v286
    %695 = vmatmul.f32.gmra.mxu0 %v677
    %v696 = vpop.f32.mrf.mxu0
    %v697 = vadd.f32 0.0, %v696
    %698 = vdwg.mxu0
    %699 = vmatpush.msra.mxu0 0.0
    %700 = vmatpush.msra.mxu0 0.0
    %701 = vmatpush.msra.mxu0 0.0
    %702 = vmatpush.msra.mxu0 0.0
    %703 = vmatpush.msra.mxu0 0.0
    %704 = vmatpush.msra.mxu0 0.0
    %705 = vmatpush.msra.mxu0 0.0
    %706 = vmatpush.msra.mxu0 0.0
    %707 = vmatpush.msra.mxu0 %v301
    %708 = vmatpush.msra.mxu0 %v299
    %709 = vmatpush.msra.mxu0 %v297
    %710 = vmatpush.msra.mxu0 %v295
    %711 = vmatpush.msra.mxu0 %v293
    %712 = vmatpush.msra.mxu0 %v291
    %713 = vmatpush.msra.mxu0 %v289
    %714 = vmatpush.msra.mxu0 %v287
    %715 = vmatmul.f32.gmra.mxu0 %v677
    %v716 = vpop.f32.mrf.mxu0
    %v717 = vadd.f32 0.0, %v716
    %718 = vdwg.mxu0
    %v719 = vadd.f32 %v234, %v697
    %v720 = vadd.f32 %v278, %v717
    %v721 = vmul.f32 %v719, %v309
    %v722 = vmul.f32 %v720, %v310
    %v723 = vtanh.pop %v721
    %v724 = vtanh.pop %v722
    %v725 = vmul.f32 %v723, 0.5
    %v726 = vmul.f32 %v724, 0.5
    %v727 = vadd.f32 %v725, 0.5
    %v728 = vadd.f32 %v726, 0.5
    %v729 = vsel %vm307, %v723, %v727
    %v730 = vsel %vm308, %v724, %v728
    %v731 = vmul.f32 %v729, %v671
    %v732 = vmul.f32 %v729, %v730
    %734 = vrot.lane.b32.xlu0 %v732, 64
    %v735 = vpop.permute.xlu0 %734
    %v737 = vadd.f32 %v731, %v735
    %v738 = vtanh.pop %v737
    %v739 = vmul.f32 %v730, %v738
    %741 = vrot.lane.b32.xlu0 %v739, 64
    %v742 = vpop.permute.xlu0 %741
    %v743 = vsel %vm341, %v742, 0
    %745 = vmatpush.msra.mxu0 0.0
    %746 = vmatpush.msra.mxu0 0.0
    %747 = vmatpush.msra.mxu0 0.0
    %748 = vmatpush.msra.mxu0 0.0
    %749 = vmatpush.msra.mxu0 0.0
    %750 = vmatpush.msra.mxu0 0.0
    %751 = vmatpush.msra.mxu0 0.0
    %752 = vmatpush.msra.mxu0 0.0
    %753 = vmatpush.msra.mxu0 %v300
    %754 = vmatpush.msra.mxu0 %v298
    %755 = vmatpush.msra.mxu0 %v296
    %756 = vmatpush.msra.mxu0 %v294
    %757 = vmatpush.msra.mxu0 %v292
    %758 = vmatpush.msra.mxu0 %v290
    %759 = vmatpush.msra.mxu0 %v288
    %760 = vmatpush.msra.mxu0 %v286
    %761 = vmatmul.f32.gmra.mxu0 %v743
    %v762 = vpop.f32.mrf.mxu0
    %v763 = vadd.f32 0.0, %v762
    %764 = vdwg.mxu0
    %765 = vmatpush.msra.mxu0 0.0
    %766 = vmatpush.msra.mxu0 0.0
    %767 = vmatpush.msra.mxu0 0.0
    %768 = vmatpush.msra.mxu0 0.0
    %769 = vmatpush.msra.mxu0 0.0
    %770 = vmatpush.msra.mxu0 0.0
    %771 = vmatpush.msra.mxu0 0.0
    %772 = vmatpush.msra.mxu0 0.0
    %773 = vmatpush.msra.mxu0 %v301
    %774 = vmatpush.msra.mxu0 %v299
    %775 = vmatpush.msra.mxu0 %v297
    %776 = vmatpush.msra.mxu0 %v295
    %777 = vmatpush.msra.mxu0 %v293
    %778 = vmatpush.msra.mxu0 %v291
    %779 = vmatpush.msra.mxu0 %v289
    %780 = vmatpush.msra.mxu0 %v287
    %781 = vmatmul.f32.gmra.mxu0 %v743
    %v782 = vpop.f32.mrf.mxu0
    %v783 = vadd.f32 0.0, %v782
    %784 = vdwg.mxu0
    %v785 = vadd.f32 %v237, %v763
    %v786 = vadd.f32 %v281, %v783
    %v787 = vmul.f32 %v785, %v309
    %v788 = vmul.f32 %v786, %v310
    %v789 = vtanh.pop %v787
    %v790 = vtanh.pop %v788
    %v791 = vmul.f32 %v789, 0.5
    %v792 = vmul.f32 %v790, 0.5
    %v793 = vadd.f32 %v791, 0.5
    %v794 = vadd.f32 %v792, 0.5
    %v795 = vsel %vm307, %v789, %v793
    %v796 = vsel %vm308, %v790, %v794
    %v797 = vmul.f32 %v795, %v737
    %v798 = vmul.f32 %v795, %v796
    %800 = vrot.lane.b32.xlu0 %v798, 64
    %v801 = vpop.permute.xlu0 %800
    %v803 = vadd.f32 %v797, %v801
    %v804 = vtanh.pop %v803
    %v805 = vmul.f32 %v796, %v804
    %807 = vrot.lane.b32.xlu0 %v805, 64
    %v808 = vpop.permute.xlu0 %807
    %v809 = vsel %vm341, %v808, 0
    %811 = vmatpush.msra.mxu0 0.0
    %812 = vmatpush.msra.mxu0 0.0
    %813 = vmatpush.msra.mxu0 0.0
    %814 = vmatpush.msra.mxu0 0.0
    %815 = vmatpush.msra.mxu0 0.0
    %816 = vmatpush.msra.mxu0 0.0
    %817 = vmatpush.msra.mxu0 0.0
    %818 = vmatpush.msra.mxu0 0.0
    %819 = vmatpush.msra.mxu0 %v300
    %820 = vmatpush.msra.mxu0 %v298
    %821 = vmatpush.msra.mxu0 %v296
    %822 = vmatpush.msra.mxu0 %v294
    %823 = vmatpush.msra.mxu0 %v292
    %824 = vmatpush.msra.mxu0 %v290
    %825 = vmatpush.msra.mxu0 %v288
    %826 = vmatpush.msra.mxu0 %v286
    %827 = vmatmul.f32.gmra.mxu0 %v809
    %v828 = vpop.f32.mrf.mxu0
    %v829 = vadd.f32 0.0, %v828
    %830 = vdwg.mxu0
    %831 = vmatpush.msra.mxu0 0.0
    %832 = vmatpush.msra.mxu0 0.0
    %833 = vmatpush.msra.mxu0 0.0
    %834 = vmatpush.msra.mxu0 0.0
    %835 = vmatpush.msra.mxu0 0.0
    %836 = vmatpush.msra.mxu0 0.0
    %837 = vmatpush.msra.mxu0 0.0
    %838 = vmatpush.msra.mxu0 0.0
    %839 = vmatpush.msra.mxu0 %v301
    %840 = vmatpush.msra.mxu0 %v299
    %841 = vmatpush.msra.mxu0 %v297
    %842 = vmatpush.msra.mxu0 %v295
    %843 = vmatpush.msra.mxu0 %v293
    %844 = vmatpush.msra.mxu0 %v291
    %845 = vmatpush.msra.mxu0 %v289
    %846 = vmatpush.msra.mxu0 %v287
    %847 = vmatmul.f32.gmra.mxu0 %v809
    %v848 = vpop.f32.mrf.mxu0
    %v849 = vadd.f32 0.0, %v848
    %850 = vdwg.mxu0
    %v851 = vadd.f32 %v240, %v829
    %v852 = vadd.f32 %v284, %v849
    %v853 = vmul.f32 %v851, %v309
    %v854 = vmul.f32 %v852, %v310
    %v855 = vtanh.pop %v853
    %v856 = vtanh.pop %v854
    %v857 = vmul.f32 %v855, 0.5
    %v858 = vmul.f32 %v856, 0.5
    %v859 = vadd.f32 %v857, 0.5
    %v860 = vadd.f32 %v858, 0.5
    %v861 = vsel %vm307, %v855, %v859
    %v862 = vsel %vm308, %v856, %v860
    %v863 = vmul.f32 %v861, %v803
    %v864 = vmul.f32 %v861, %v862
    %866 = vrot.lane.b32.xlu0 %v864, 64
    %v867 = vpop.permute.xlu0 %866
    %v869 = vadd.f32 %v863, %v867
    %v870 = vtanh.pop %v869
    %v871 = vmul.f32 %v862, %v870
    %873 = vrot.lane.b32.xlu0 %v803, 64
    %v874 = vpop.permute.xlu0 %873
    %877 = vrot.lane.b32.xlu0 %v869, 64
    %v878 = vpop.permute.xlu0 %877
    %v880 = vsel %vm311, %v874, %v878
    %883 = vrot.lane.b32.xlu0 %v871, 64
    %v884 = vpop.permute.xlu0 %883
    %v886 = vsel %vm311, %v808, %v884
    %888 = vrot.lane.b32.xlu0 %v880, 32
    %v889 = vpop.permute.xlu0 %888
    %892 = vrot.lane.b32.xlu0 %v886, 32
    %v893 = vpop.permute.xlu0 %892
    %895 = vrot.lane.b32.xlu0 %v880, 64
    %v896 = vpop.permute.xlu0 %895
    %v898 = vsel %vm75, %v886, %v889
    %v899 = vsel %vm341, %v898, %v893
    %vm900 = vcmask 785408
    %v901 = vsel %vm900, %v899, %v896
    %v902 = vtanh.pop %v901
    %v903 = vld [vmem:[%s1 + $0x20] sm:$0xff]
    %v904 = vld [vmem:[%s1 + $0x28] sm:$0xff]
    %v905 = vld [vmem:[%s1 + $0x30] sm:$0xff]
    %v906 = vld [vmem:[%s1 + $0x38] sm:$0xff]
    %v907 = vld [vmem:[%s1 + $0x40] sm:$0xff]
    %v908 = vld [vmem:[%s1 + $0x48] sm:$0xff]
    %v909 = vld [vmem:[%s1 + $0x50] sm:$0xff]
    %v910 = vld [vmem:[%s1 + $0x58] sm:$0xff]
    %v911 = vld [vmem:[%s1 + $0x60] sm:$0xff]
    %v912 = vld [vmem:[%s1 + $0x68] sm:$0xff]
    %v913 = vld [vmem:[%s1 + $0x70] sm:$0xff]
    %v914 = vld [vmem:[%s1 + $0x78] sm:$0xff]
    %v915 = vld [vmem:[%s1 + $0x80] sm:$0xff]
    %v916 = vld [vmem:[%s1 + $0x88] sm:$0xff]
    %v917 = vld [vmem:[%s1 + $0x90] sm:$0xff]
    %v918 = vld [vmem:[%s1 + $0x98] sm:$0xff]
    %v919 = vld [vmem:[%s1 + $0xa0] sm:$0x1]
    %v920 = vperm.slane %v919, 0
    %921 = vmatpush.msra.mxu0 %v918
    %922 = vmatpush.msra.mxu0 %v917
    %923 = vmatpush.msra.mxu0 %v916
    %924 = vmatpush.msra.mxu0 %v915
    %925 = vmatpush.msra.mxu0 %v914
    %926 = vmatpush.msra.mxu0 %v913
    %927 = vmatpush.msra.mxu0 %v912
    %928 = vmatpush.msra.mxu0 %v911
    %929 = vmatpush.msra.mxu0 %v910
    %930 = vmatpush.msra.mxu0 %v909
    %931 = vmatpush.msra.mxu0 %v908
    %932 = vmatpush.msra.mxu0 %v907
    %933 = vmatpush.msra.mxu0 %v906
    %934 = vmatpush.msra.mxu0 %v905
    %935 = vmatpush.msra.mxu0 %v904
    %936 = vmatpush.msra.mxu0 %v903
    %937 = vmatmul.f32.gmra.mxu0 %v902
    %v938 = vpop.f32.mrf.mxu0
    %v939 = vadd.f32 %v920, %v938
    %940 = vdwg.mxu0
    %vm941 = vcmask 254976
    %942 = vst.msk [vmem:[#allocation2] sm:$0x3] %vm941, %v939
    // Predicated region
    $region14: #{qst_encoder_forward.1} parent=1 // pred_check
      _
    $region15: #{qst_encoder_forward.1} parent=1 // pred_check_branch
      %944 = sbr.rel (0) target = $region17
    $region16: #{qst_encoder_forward.1} parent=1 // pred_region
      %946 = vsyncadd [#allocation3], 0
      %s948 = sshll.u32 [#allocation2], 4
      %s949 = int_to_ptr.vmem [resolvable:$true] %s948
      %s950 = sshll.u32 %s3, 4
      %s951 = int_to_ptr.hbm [resolvable:$true] %s950
      %953 = dma.vmem_to_hbm [thread:$0]  %s949, 32, %s951, [#allocation3]
    $region17: #{qst_encoder_forward.1} parent=1 // pred_fallthru
      _
    // Predicated region
    $region18: #{qst_encoder_forward.1} parent=1 // pred_check
      _
    $region19: #{qst_encoder_forward.1} parent=1 // pred_check_branch
      %955 = sbr.rel (0) target = $region21
    $region20: #{qst_encoder_forward.1} parent=1 // pred_region
      %957 = dma.done [#allocation3], 32
    $region21: #{qst_encoder_forward.1} parent=1 // pred_fallthru
      _
    %958 = vsyncpa [#allocation3], 1

</llo_original>
